<compile_context>
chip_gen: v7x
topology: tpu7x:2x2x1
jax: 0.10.0
libtpu: 0.0.40
codegen_flags: <defaults>
</compile_context>

<pallas_src>
import functools

import jax
import jax.numpy as jnp
from jax import lax
from jax.experimental import pallas as pl
from jax.experimental.pallas import tpu as pltpu

_MAX_BATCH_TILE = 8192  # rows per grid step (~2 MiB f32 input block)


def _round_up(x, m):
    return ((x + m - 1) // m) * m


def _choose_batch_tile(B):
    """Pick the per-grid-step batch tile.

    * tiny B: one full-batch block (block dims == array dims).
    * otherwise: aim for >= 2 grid points (both v7x TensorCores busy), rounded
      up to a multiple of 128 so the lane-major head store stays legal, capped
      at _MAX_BATCH_TILE to respect the VMEM budget.
    """
    if B <= 128:
        return B
    tile = _round_up(pl.cdiv(B, 2), 128)
    tile = min(tile, _MAX_BATCH_TILE)
    if tile >= B:
        return B
    return tile


def _fused_mlp_kernel(x_ref, *refs, num_layers: int, head_mode: str):
    """refs = (w1, b1, w2, b2, ..., wN, bN, o_ref).

    Hidden weights are (in_dim, out_dim) (pre-transposed, possibly bf16).
    When pref_embedding == 1 the last weight is kept in (1, in_dim) layout:
      head_mode == "row_mxu": trans-B MXU contraction -> (1, tile_b) lane-major.
      head_mode == "col_vpu": VPU broadcast-multiply + lane reduce -> (tile_b, 1).
      head_mode == "dense":   ordinary matmul -> (tile_b, out_dim).
    Biases are (1, out_dim) f32; ReLU between layers, none after the last.
    """
    o_ref = refs[-1]
    h = x_ref[...]
    for li in range(num_layers):
        w = refs[2 * li][...]
        b = refs[2 * li + 1][...]
        is_last = li == num_layers - 1
        if is_last and head_mode == "row_mxu":
            # w (1, K) x h (tile_b, K), contracted on K -> (1, tile_b).
            # Lane-dense result: stored with full 128-lane vst (no masked
            # single-lane partial stores, tile_b/128 result vregs).
            y = lax.dot_general(
                w, h, (((1,), (1,)), ((), ())),
                preferred_element_type=jnp.float32) + b
        elif is_last and head_mode == "col_vpu":
            # Tiny-batch path: per-row lane reduce (as in the validated
            # original kernel).  Output is (tile_b, 1).
            y = jnp.sum(h * w, axis=-1, keepdims=True) + b
        else:
            # Hidden layer (or dense head): bf16 operands, f32 accumulate.
            y = jnp.dot(h.astype(w.dtype), w,
                        preferred_element_type=jnp.float32) + b
        if not is_last:
            y = jnp.maximum(y, 0.0)
        h = y
    o_ref[...] = h.astype(o_ref.dtype)


def fused_mlp(x, weights, biases, *, use_bf16_matmul=True):
    """Run the fused MLP. x: (B, in_dim) f32. weights/biases from init_params."""
    B, in_dim = x.shape
    num_layers = len(weights)
    out_dim = biases[-1].shape[-1]

    tile_b = _choose_batch_tile(B)
    grid = (pl.cdiv(B, tile_b),)   # no HBM padding: boundary block is masked

    if out_dim == 1:
        head_mode = "row_mxu" if tile_b % 128 == 0 else "col_vpu"
    else:
        head_mode = "dense"
    lane_major_out = head_mode == "row_mxu"

    compute_dtype = jnp.bfloat16 if use_bf16_matmul else jnp.float32

    in_specs = [pl.BlockSpec((tile_b, in_dim), lambda i: (i, 0))]
    args = [x]
    for li, (w, b) in enumerate(zip(weights, biases)):
        is_head_1 = (li == num_layers - 1) and (out_dim == 1)
        if not is_head_1:
            w = w.astype(compute_dtype)  # tiny, cast once outside the kernel
        in_specs.append(pl.BlockSpec(w.shape, lambda i: (0, 0)))
        in_specs.append(pl.BlockSpec(b.shape, lambda i: (0, 0)))
        args.append(w)
        args.append(b)

    if lane_major_out:
        out_shape = jax.ShapeDtypeStruct((1, B), jnp.float32)
        out_spec = pl.BlockSpec((1, tile_b), lambda i: (0, i))
    else:
        out_shape = jax.ShapeDtypeStruct((B, out_dim), jnp.float32)
        out_spec = pl.BlockSpec((tile_b, out_dim), lambda i: (i, 0))

    kernel = functools.partial(
        _fused_mlp_kernel, num_layers=num_layers, head_mode=head_mode
    )
    out = pl.pallas_call(
        kernel,
        out_shape=out_shape,
        grid=grid,
        in_specs=in_specs,
        out_specs=out_spec,
        compiler_params=pltpu.CompilerParams(
            dimension_semantics=("parallel",),
            vmem_limit_bytes=32 * 1024 * 1024,
        ),
    )(*args)
    # (1, B) -> (B, 1) is a trivial reshape of a tiny array; inputs never pad.
    return out.reshape(B, out_dim)


def init_params(key, layers):
    """Match nn.Linear defaults + xavier_uniform_ on weights.

    Returns (raw_params, kernel_weights, kernel_biases):
      raw_params: [(w (out,in), b (out,))]  -- PyTorch layout, for reference math
      kernel_weights: pre-transposed (in, out); last layer with out==1 kept (1, in)
      kernel_biases: (1, out)
    """
    raw, kws, kbs = [], [], []
    n = len(layers)
    for li, (in_dim, out_dim) in enumerate(layers):
        key, kw, kb = jax.random.split(key, 3)
        a = jnp.sqrt(6.0 / (in_dim + out_dim))  # xavier uniform
        w = jax.random.uniform(kw, (out_dim, in_dim), jnp.float32, -a, a)
        bb = 1.0 / jnp.sqrt(float(in_dim))      # default Linear bias init
        b = jax.random.uniform(kb, (out_dim,), jnp.float32, -bb, bb)
        raw.append((w, b))
        is_last_n1 = (li == n - 1) and (out_dim == 1)
        # Hoist the transpose out of the forward path (done once here).
        kws.append(w if is_last_n1 else jnp.transpose(w))
        kbs.append(b.reshape(1, out_dim))
    return raw, kws, kbs


def unetwork_forward(coord, kernel_weights, kernel_biases, pref_embedding=1,
                     use_bf16_matmul=True):
    """Equivalent of UNetwork.forward: flatten, fused MLP with ReLU between layers."""
    B = coord.shape[0]
    c = coord.reshape(B, -1)  # coord.view(coord.size(0), -1)
    out_dim = kernel_biases[-1].shape[-1]
    assert out_dim == pref_embedding, (
        f"last layer out_dim ({out_dim}) must equal pref_embedding ({pref_embedding})"
    )
    y = fused_mlp(c, kernel_weights, kernel_biases,
                  use_bf16_matmul=use_bf16_matmul)
    return y.reshape(B, pref_embedding)


if __name__ == "__main__":
    key = jax.random.PRNGKey(0)

    layers = [(64, 32), (32, 32), (32, 1)]
    pref_embedding = 1

    kparams, kc1, kc2 = jax.random.split(key, 3)
    raw_params, kws, kbs = init_params(kparams, layers)

    def reference(coord):
        c = coord.reshape(coord.shape[0], -1)
        for i, (w, b) in enumerate(raw_params):
            c = c @ w.T + b
            if i < len(raw_params) - 1:
                c = jnp.maximum(c, 0.0)
        return c.reshape(coord.shape[0], pref_embedding)

    # 1) Tiny batch: single block, VPU head path, pure-f32 kernel (tight check).
    coord_small = jax.random.normal(kc1, (2, 8, 8), jnp.float32)
    out_small = jax.block_until_ready(
        unetwork_forward(coord_small, kws, kbs, pref_embedding,
                         use_bf16_matmul=False))
    ref_small = reference(coord_small)
    assert out_small.shape == (2, pref_embedding)
    assert jnp.allclose(out_small, ref_small, atol=1e-4, rtol=1e-4)

    # 2) Larger batch: exercises batch tiling (2 grid points) and the
    #    lane-dense MXU head.  f32 kernel first (tight check) ...
    coord_big = jax.random.normal(kc2, (256, 8, 8), jnp.float32)
    ref_big = reference(coord_big)
    out_big_f32 = jax.block_until_ready(
        unetwork_forward(coord_big, kws, kbs, pref_embedding,
                         use_bf16_matmul=False))
    assert out_big_f32.shape == (256, pref_embedding)
    assert jnp.allclose(out_big_f32, ref_big, atol=1e-4, rtol=1e-4)

    #    ... then the default bf16-matmul fast path (loosened tolerance).
    out_big_bf16 = jax.block_until_ready(
        unetwork_forward(coord_big, kws, kbs, pref_embedding))
    assert out_big_bf16.shape == (256, pref_embedding)
    assert jnp.allclose(out_big_bf16, ref_big, atol=5e-2, rtol=5e-2)

    print("KERNEL_OK")
</pallas_src>

<mosaic_0001>
module attributes {stable_mosaic.version = 11 : i64} {
  func.func @_fused_mlp_kernel(%arg0: i32, %arg1: memref<2x64xf32, #tpu.memory_space<vmem>>, %arg2: memref<64x32xf32, #tpu.memory_space<vmem>>, %arg3: memref<1x32xf32, #tpu.memory_space<vmem>>, %arg4: memref<32x32xf32, #tpu.memory_space<vmem>>, %arg5: memref<1x32xf32, #tpu.memory_space<vmem>>, %arg6: memref<1x32xf32, #tpu.memory_space<vmem>>, %arg7: memref<1x1xf32, #tpu.memory_space<vmem>>, %arg8: memref<2x1xf32, #tpu.memory_space<vmem>>) attributes {dimension_semantics = [#tpu.dimension_semantics<parallel>], iteration_bounds = array<i64: 1>, scalar_prefetch = 0 : i64, scratch_operands = 0 : i64, tpu.core_type = #tpu.core_type<tc>, window_params = [{transform_indices = @transform_0, window_bounds = array<i64: 2, 64>}, {pipeline_mode = #tpu.pipeline_mode<synchronous>, transform_indices = @transform_1, window_bounds = array<i64: 64, 32>}, {pipeline_mode = #tpu.pipeline_mode<synchronous>, transform_indices = @transform_2, window_bounds = array<i64: 1, 32>}, {pipeline_mode = #tpu.pipeline_mode<synchronous>, transform_indices = @transform_3, window_bounds = array<i64: 32, 32>}, {pipeline_mode = #tpu.pipeline_mode<synchronous>, transform_indices = @transform_4, window_bounds = array<i64: 1, 32>}, {pipeline_mode = #tpu.pipeline_mode<synchronous>, transform_indices = @transform_5, window_bounds = array<i64: 1, 32>}, {pipeline_mode = #tpu.pipeline_mode<synchronous>, transform_indices = @transform_6, window_bounds = array<i64: 1, 1>}, {transform_indices = @transform_7, window_bounds = array<i64: 2, 1>}]} {
    %c0 = arith.constant 0 : index
    %c0_0 = arith.constant 0 : index
    %0 = vector.load %arg1[%c0, %c0_0] : memref<2x64xf32, #tpu.memory_space<vmem>>, vector<2x64xf32>
    %c0_1 = arith.constant 0 : index
    %c0_2 = arith.constant 0 : index
    %1 = vector.load %arg2[%c0_1, %c0_2] : memref<64x32xf32, #tpu.memory_space<vmem>>, vector<64x32xf32>
    %c0_3 = arith.constant 0 : index
    %c0_4 = arith.constant 0 : index
    %2 = vector.load %arg3[%c0_3, %c0_4] : memref<1x32xf32, #tpu.memory_space<vmem>>, vector<1x32xf32>
    %cst = arith.constant dense<0.000000e+00> : vector<2x32xf32>
    %3 = tpu.matmul %0, %1, %cst {dimension_numbers = #tpu.dot_dimension_numbers<[1], [0], [0], [1], [0, 0, 1, 1], [], []>} : vector<2x64xf32>, vector<64x32xf32>, vector<2x32xf32> -> vector<2x32xf32>
    %4 = vector.broadcast %2 : vector<1x32xf32> to vector<2x32xf32>
    %5 = arith.addf %3, %4 : vector<2x32xf32>
    %cst_5 = arith.constant 0.000000e+00 : f32
    %6 = vector.broadcast %cst_5 : f32 to vector<2x32xf32>
    %7 = arith.maximumf %5, %6 : vector<2x32xf32>
    %c0_6 = arith.constant 0 : index
    %c0_7 = arith.constant 0 : index
    %8 = vector.load %arg4[%c0_6, %c0_7] : memref<32x32xf32, #tpu.memory_space<vmem>>, vector<32x32xf32>
    %c0_8 = arith.constant 0 : index
    %c0_9 = arith.constant 0 : index
    %9 = vector.load %arg5[%c0_8, %c0_9] : memref<1x32xf32, #tpu.memory_space<vmem>>, vector<1x32xf32>
    %cst_10 = arith.constant dense<0.000000e+00> : vector<2x32xf32>
    %10 = tpu.matmul %7, %8, %cst_10 {dimension_numbers = #tpu.dot_dimension_numbers<[1], [0], [0], [1], [0, 0, 1, 1], [], []>} : vector<2x32xf32>, vector<32x32xf32>, vector<2x32xf32> -> vector<2x32xf32>
    %11 = vector.broadcast %9 : vector<1x32xf32> to vector<2x32xf32>
    %12 = arith.addf %10, %11 : vector<2x32xf32>
    %cst_11 = arith.constant 0.000000e+00 : f32
    %13 = vector.broadcast %cst_11 : f32 to vector<2x32xf32>
    %14 = arith.maximumf %12, %13 : vector<2x32xf32>
    %c0_12 = arith.constant 0 : index
    %c0_13 = arith.constant 0 : index
    %15 = vector.load %arg6[%c0_12, %c0_13] : memref<1x32xf32, #tpu.memory_space<vmem>>, vector<1x32xf32>
    %c0_14 = arith.constant 0 : index
    %c0_15 = arith.constant 0 : index
    %16 = vector.load %arg7[%c0_14, %c0_15] : memref<1x1xf32, #tpu.memory_space<vmem>>, vector<1x1xf32>
    %17 = vector.broadcast %15 : vector<1x32xf32> to vector<2x32xf32>
    %18 = arith.mulf %14, %17 : vector<2x32xf32>
    %cst_16 = arith.constant dense<0.000000e+00> : vector<2xf32>
    %19 = vector.multi_reduction <add>, %18, %cst_16 [1] : vector<2x32xf32> to vector<2xf32>
    %20 = vector.shape_cast %19 : vector<2xf32> to vector<2x1xf32>
    %21 = vector.broadcast %16 : vector<1x1xf32> to vector<2x1xf32>
    %22 = arith.addf %20, %21 : vector<2x1xf32>
    %c0_17 = arith.constant 0 : index
    %c0_18 = arith.constant 0 : index
    %23 = vector.load %arg8[%c0_17, %c0_18] : memref<2x1xf32, #tpu.memory_space<vmem>>, vector<2x1xf32>
    tpu.vector_store %arg8[%c0_17, %c0_18], %22 {strides = array<i32>} : memref<2x1xf32, #tpu.memory_space<vmem>>, vector<2x1xf32>,
    return
  }
  func.func @transform_0(%arg0: i32) -> (i32, i32) {
    %c0_i32 = arith.constant 0 : i32
    %c0_i32_0 = arith.constant 0 : i32
    return %arg0, %c0_i32 : i32, i32
  }
  func.func @transform_1(%arg0: i32) -> (i32, i32) {
    %c0_i32 = arith.constant 0 : i32
    %c0_i32_0 = arith.constant 0 : i32
    %c0_i32_1 = arith.constant 0 : i32
    return %c0_i32, %c0_i32_0 : i32, i32
  }
  func.func @transform_2(%arg0: i32) -> (i32, i32) {
    %c0_i32 = arith.constant 0 : i32
    %c0_i32_0 = arith.constant 0 : i32
    %c0_i32_1 = arith.constant 0 : i32
    return %c0_i32, %c0_i32_0 : i32, i32
  }
  func.func @transform_3(%arg0: i32) -> (i32, i32) {
    %c0_i32 = arith.constant 0 : i32
    %c0_i32_0 = arith.constant 0 : i32
    %c0_i32_1 = arith.constant 0 : i32
    return %c0_i32, %c0_i32_0 : i32, i32
  }
  func.func @transform_4(%arg0: i32) -> (i32, i32) {
    %c0_i32 = arith.constant 0 : i32
    %c0_i32_0 = arith.constant 0 : i32
    %c0_i32_1 = arith.constant 0 : i32
    return %c0_i32, %c0_i32_0 : i32, i32
  }
  func.func @transform_5(%arg0: i32) -> (i32, i32) {
    %c0_i32 = arith.constant 0 : i32
    %c0_i32_0 = arith.constant 0 : i32
    %c0_i32_1 = arith.constant 0 : i32
    return %c0_i32, %c0_i32_0 : i32, i32
  }
  func.func @transform_6(%arg0: i32) -> (i32, i32) {
    %c0_i32 = arith.constant 0 : i32
    %c0_i32_0 = arith.constant 0 : i32
    %c0_i32_1 = arith.constant 0 : i32
    return %c0_i32, %c0_i32_0 : i32, i32
  }
  func.func @transform_7(%arg0: i32) -> (i32, i32) {
    %c0_i32 = arith.constant 0 : i32
    %c0_i32_0 = arith.constant 0 : i32
    return %arg0, %c0_i32 : i32, i32
  }
}

</mosaic_0001>

<llo_original>
// kernel: tpu_custom_call.1
$region0: #{tpu_custom_call.1}
  #allocation0 [shape = 'u32[]', space=smem, size = 0x4, offset = 0x4, fixed_abs, tag = 'smem constant byte address 0x4 - core index']
  #allocation1 [shape = 'u32[144,128]{1,0:T(1,128)}', space=vmem, size = 0x12000, scoped, tag = 'internal scratch']
  #allocation2 [shape = 'f32[1,1]{1,0:T(1,128)S(1)}', space=vmem, size = 0x200, scoped, tag = 'scoped memory for tpu_custom_call.1']
  %s0 = inlined_call_operand.vmem [shape: f32[2,64], index: 0, kind: input, shape index: {}]
  %s1 = inlined_call_operand.vmem [shape: f32[64,32], index: 1, kind: input, shape index: {}]
  %s2 = inlined_call_operand.vmem [shape: f32[1,32], index: 2, kind: input, shape index: {}]
  %s3 = inlined_call_operand.vmem [shape: f32[32,32], index: 3, kind: input, shape index: {}]
  %s4 = inlined_call_operand.vmem [shape: f32[1,32], index: 4, kind: input, shape index: {}]
  %s5 = inlined_call_operand.vmem [shape: f32[1,32], index: 5, kind: input, shape index: {}]
  %s6 = inlined_call_operand.<no memory space> [shape: f32[1,1], index: 6, kind: input, shape index: {}]
  %s7 = inlined_call_operand.vmem [shape: f32[2,1], index: 7, kind: output, shape index: {}]
  %s8 = sld [smem:[#allocation0]]
  $region38: #{tpu_custom_call.1} parent=0
    _
  %s10 = ssub.s32 1, %s8
  %s11 = scalar_select 0, %s10, %s8
  %v12 = vstv %s6
  %13 = vst [vmem:[#allocation2] sm:$0x1] %v12
  // Predicated region
  $region2: #{tpu_custom_call.1} parent=0 // pred_check
    _
  $region3: #{tpu_custom_call.1} parent=0 // pred_check_branch
    %15 = sbr.rel (0) target = $region5
  $region4: #{tpu_custom_call.1} parent=0 // pred_region
    _
  $region5: #{tpu_custom_call.1} parent=0 // pred_fallthru
    _
  // Predicated region
  $region6: #{tpu_custom_call.1} parent=0 // pred_check
    _
  $region7: #{tpu_custom_call.1} parent=0 // pred_check_branch
    %17 = sbr.rel (0) target = $region9
  $region8: #{tpu_custom_call.1} parent=0 // pred_region
    _
  $region9: #{tpu_custom_call.1} parent=0 // pred_fallthru
    _
  // Predicated region
  $region10: #{tpu_custom_call.1} parent=0 // pred_check
    _
  $region11: #{tpu_custom_call.1} parent=0 // pred_check_branch
    %19 = sbr.rel (0) target = $region13
  $region12: #{tpu_custom_call.1} parent=0 // pred_region
    _
  $region13: #{tpu_custom_call.1} parent=0 // pred_fallthru
    _
  // Predicated region
  $region14: #{tpu_custom_call.1} parent=0 // pred_check
    _
  $region15: #{tpu_custom_call.1} parent=0 // pred_check_branch
    %21 = sbr.rel (0) target = $region17
  $region16: #{tpu_custom_call.1} parent=0 // pred_region
    _
  $region17: #{tpu_custom_call.1} parent=0 // pred_fallthru
    _
  // Predicated region
  $region18: #{tpu_custom_call.1} parent=0 // pred_check
    _
  $region19: #{tpu_custom_call.1} parent=0 // pred_check_branch
    %23 = sbr.rel (0) target = $region21
  $region20: #{tpu_custom_call.1} parent=0 // pred_region
    _
  $region21: #{tpu_custom_call.1} parent=0 // pred_fallthru
    _
  // Predicated region
  $region22: #{tpu_custom_call.1} parent=0 // pred_check
    _
  $region23: #{tpu_custom_call.1} parent=0 // pred_check_branch
    %25 = sbr.rel (0) target = $region25
  $region24: #{tpu_custom_call.1} parent=0 // pred_region
    _
  $region25: #{tpu_custom_call.1} parent=0 // pred_fallthru
    _
  // Predicated region
  $region26: #{tpu_custom_call.1} parent=0 // pred_check
    _
  $region27: #{tpu_custom_call.1} parent=0 // pred_check_branch
    %27 = sbr.rel (0) target = $region29
  $region28: #{tpu_custom_call.1} parent=0 // pred_region
    _
  $region29: #{tpu_custom_call.1} parent=0 // pred_fallthru
    _
  %v28 = vld [vmem:[%s0] sm:$0x3]
  %v29 = vld [vmem:[%s1] sm:$0xff]
  %v30 = vld [vmem:[%s1 + $0x8] sm:$0xff]
  %v31 = vld [vmem:[%s1 + $0x10] sm:$0xff]
  %v32 = vld [vmem:[%s1 + $0x18] sm:$0xff]
  %v33 = vld [vmem:[%s1 + $0x20] sm:$0xff]
  %v34 = vld [vmem:[%s1 + $0x28] sm:$0xff]
  %v35 = vld [vmem:[%s1 + $0x30] sm:$0xff]
  %v36 = vld [vmem:[%s1 + $0x38] sm:$0xff]
  %v37 = vld [vmem:[%s2] sm:$0x1]
  %v39 = vlaneseq
  %v40 = vshrl.u32 %v39, 7
  %v41 = vsub.s32 0, %v40
  %v42 = vrot.slane %v37, %v41
  %vm44 = vcmask 523264
  %v46 = vsel %vm44, %v28, 0
  %48 = vmatprep.subr.mxu0 0.0
  %49 = vmatpush1.msra.mxu0 %v29
  %50 = vmatprep.subr.mxu0 0.0
  %51 = vmatpush1.msra.mxu0 %v30
  %52 = vmatprep.subr.mxu0 0.0
  %53 = vmatpush1.msra.mxu0 %v31
  %54 = vmatprep.subr.mxu0 0.0
  %55 = vmatpush1.msra.mxu0 %v32
  %56 = vmatprep.subr.mxu0 0.0
  %57 = vmatpush1.msra.mxu0 %v33
  %58 = vmatprep.subr.mxu0 0.0
  %59 = vmatpush1.msra.mxu0 %v34
  %60 = vmatprep.subr.mxu0 0.0
  %61 = vmatpush1.msra.mxu0 %v35
  %62 = vmatprep.subr.mxu0 0.0
  %63 = vmatpush1.msra.mxu0 %v36
  %64 = vmatprep.subr.mxu0 0.0
  %65 = vmatpush1.msra.mxu0 0.0
  %66 = vmatprep.subr.mxu0 0.0
  %67 = vmatpush1.msra.mxu0 0.0
  %68 = vmatprep.subr.mxu0 0.0
  %69 = vmatpush1.msra.mxu0 0.0
  %70 = vmatprep.subr.mxu0 0.0
  %71 = vmatpush1.msra.mxu0 0.0
  %72 = vmatprep.subr.mxu0 0.0
  %73 = vmatpush1.msra.mxu0 0.0
  %74 = vmatprep.subr.mxu0 0.0
  %75 = vmatpush1.msra.mxu0 0.0
  %76 = vmatprep.subr.mxu0 0.0
  %77 = vmatpush1.msra.mxu0 0.0
  %78 = vmatprep.subr.mxu0 0.0
  %79 = vmatpush1.msra.mxu0 0.0
  %80 = vmatprep.subr.mxu0 0.0
  %81 = vmatpush1.msra.mxu0 0.0
  %82 = vmatprep.subr.mxu0 0.0
  %83 = vmatpush1.msra.mxu0 0.0
  %84 = vmatprep.subr.mxu0 0.0
  %85 = vmatpush1.msra.mxu0 0.0
  %86 = vmatprep.subr.mxu0 0.0
  %87 = vmatpush1.msra.mxu0 0.0
  %88 = vmatprep.subr.mxu0 0.0
  %89 = vmatpush1.msra.mxu0 0.0
  %90 = vmatprep.subr.mxu0 0.0
  %91 = vmatpush1.msra.mxu0 0.0
  %92 = vmatprep.subr.mxu0 0.0
  %93 = vmatpush1.msra.mxu0 0.0
  %94 = vmatprep.subr.mxu0 0.0
  %95 = vmatpush1.msra.mxu0 0.0
  %96 = vmatprep.subr.mxu0 0.0
  %97 = vmatpush1.msra.mxu0 0.0
  %98 = vmatprep.subr.mxu0 0.0
  %99 = vmatpush1.msra.mxu0 0.0
  %100 = vmatprep.subr.mxu0 0.0
  %101 = vmatpush1.msra.mxu0 0.0
  %102 = vmatprep.subr.mxu0 0.0
  %103 = vmatpush1.msra.mxu0 0.0
  %104 = vmatprep.subr.mxu0 0.0
  %105 = vmatpush1.msra.mxu0 0.0
  %106 = vmatprep.subr.mxu0 0.0
  %107 = vmatpush1.msra.mxu0 0.0
  %108 = vmatprep.subr.mxu0 0.0
  %109 = vmatpush1.msra.mxu0 0.0
  %110 = vmatprep.subr.mxu0 0.0
  %111 = vmatpush1.msra.mxu0 0.0
  %112 = vmatprep.mubr.f32.mxu0 0.0
  %113 = vmatmul.mubr.f32.gmra.mrb[0].mxu0 %v46
  %v114 = vpop.f32.mrb[0].mxu0
  %v115 = vadd.f32 %v42, %v114
  %v116 = vpop.f32.mrb[0].mxu0
  %117 = vdwg.mxu0
  %v118 = vmax.f32 %v115, 0.0
  %v119 = vld [vmem:[%s3] sm:$0xff]
  %v120 = vld [vmem:[%s3 + $0x8] sm:$0xff]
  %v121 = vld [vmem:[%s3 + $0x10] sm:$0xff]
  %v122 = vld [vmem:[%s3 + $0x18] sm:$0xff]
  %v123 = vld [vmem:[%s4] sm:$0x1]
  %v125 = vlaneseq
  %v126 = vshrl.u32 %v125, 7
  %v127 = vsub.s32 0, %v126
  %v128 = vrot.slane %v123, %v127
  %vm130 = vcmask 261120
  %v132 = vsel %vm130, %v118, 0
  %134 = vmatprep.subr.mxu0 0.0
  %135 = vmatpush1.msra.mxu0 %v119
  %136 = vmatprep.subr.mxu0 0.0
  %137 = vmatpush1.msra.mxu0 %v120
  %138 = vmatprep.subr.mxu0 0.0
  %139 = vmatpush1.msra.mxu0 %v121
  %140 = vmatprep.subr.mxu0 0.0
  %141 = vmatpush1.msra.mxu0 %v122
  %142 = vmatprep.subr.mxu0 0.0
  %143 = vmatpush1.msra.mxu0 0.0
  %144 = vmatprep.subr.mxu0 0.0
  %145 = vmatpush1.msra.mxu0 0.0
  %146 = vmatprep.subr.mxu0 0.0
  %147 = vmatpush1.msra.mxu0 0.0
  %148 = vmatprep.subr.mxu0 0.0
  %149 = vmatpush1.msra.mxu0 0.0
  %150 = vmatprep.subr.mxu0 0.0
  %151 = vmatpush1.msra.mxu0 0.0
  %152 = vmatprep.subr.mxu0 0.0
  %153 = vmatpush1.msra.mxu0 0.0
  %154 = vmatprep.subr.mxu0 0.0
  %155 = vmatpush1.msra.mxu0 0.0
  %156 = vmatprep.subr.mxu0 0.0
  %157 = vmatpush1.msra.mxu0 0.0
  %158 = vmatprep.subr.mxu0 0.0
  %159 = vmatpush1.msra.mxu0 0.0
  %160 = vmatprep.subr.mxu0 0.0
  %161 = vmatpush1.msra.mxu0 0.0
  %162 = vmatprep.subr.mxu0 0.0
  %163 = vmatpush1.msra.mxu0 0.0
  %164 = vmatprep.subr.mxu0 0.0
  %165 = vmatpush1.msra.mxu0 0.0
  %166 = vmatprep.subr.mxu0 0.0
  %167 = vmatpush1.msra.mxu0 0.0
  %168 = vmatprep.subr.mxu0 0.0
  %169 = vmatpush1.msra.mxu0 0.0
  %170 = vmatprep.subr.mxu0 0.0
  %171 = vmatpush1.msra.mxu0 0.0
  %172 = vmatprep.subr.mxu0 0.0
  %173 = vmatpush1.msra.mxu0 0.0
  %174 = vmatprep.subr.mxu0 0.0
  %175 = vmatpush1.msra.mxu0 0.0
  %176 = vmatprep.subr.mxu0 0.0
  %177 = vmatpush1.msra.mxu0 0.0
  %178 = vmatprep.subr.mxu0 0.0
  %179 = vmatpush1.msra.mxu0 0.0
  %180 = vmatprep.subr.mxu0 0.0
  %181 = vmatpush1.msra.mxu0 0.0
  %182 = vmatprep.subr.mxu0 0.0
  %183 = vmatpush1.msra.mxu0 0.0
  %184 = vmatprep.subr.mxu0 0.0
  %185 = vmatpush1.msra.mxu0 0.0
  %186 = vmatprep.subr.mxu0 0.0
  %187 = vmatpush1.msra.mxu0 0.0
  %188 = vmatprep.subr.mxu0 0.0
  %189 = vmatpush1.msra.mxu0 0.0
  %190 = vmatprep.subr.mxu0 0.0
  %191 = vmatpush1.msra.mxu0 0.0
  %192 = vmatprep.subr.mxu0 0.0
  %193 = vmatpush1.msra.mxu0 0.0
  %194 = vmatprep.subr.mxu0 0.0
  %195 = vmatpush1.msra.mxu0 0.0
  %196 = vmatprep.subr.mxu0 0.0
  %197 = vmatpush1.msra.mxu0 0.0
  %198 = vmatprep.mubr.f32.mxu0 0.0
  %199 = vmatmul.mubr.f32.gmra.mrb[0].mxu0 %v132
  %v200 = vpop.f32.mrb[0].mxu0
  %v201 = vadd.f32 %v128, %v200
  %v202 = vpop.f32.mrb[0].mxu0
  %203 = vdwg.mxu0
  %v204 = vmax.f32 %v201, 0.0
  %v205 = vld [vmem:[%s5] sm:$0x1]
  %v206 = vld [vmem:[#allocation2] sm:$0x1]
  %v208 = vlaneseq
  %v209 = vshrl.u32 %v208, 7
  %v210 = vsub.s32 0, %v209
  %v211 = vrot.slane %v205, %v210
  %v213 = vmul.f32 %v204, %v211
  %vm214 = vcmask 254976
  %v215 = vsel %vm214, %v213, 0.0
  %216 = vadd.xlane.f32.xlu0 %v215
  %v217 = vpop.xlane.xlu0 %216
  %v219 = vlaneseq
  %v220 = vshrl.u32 %v219, 7
  %v221 = vsub.s32 0, %v220
  %v222 = vrot.slane %v206, %v221
  %v224 = vadd.f32 %v217, %v222
  %vm225 = vcmask 1024
  %226 = vst.msk [vmem:[%s7] sm:$0x3] %vm225, %v224
  // Predicated region
  $region30: #{tpu_custom_call.1} parent=0 // pred_check
    _
  $region31: #{tpu_custom_call.1} parent=0 // pred_check_branch
    %228 = sbr.rel (0) target = $region33
  $region32: #{tpu_custom_call.1} parent=0 // pred_region
    _
  $region33: #{tpu_custom_call.1} parent=0 // pred_fallthru
    _
  // Predicated region
  $region34: #{tpu_custom_call.1} parent=0 // pred_check
    _
  $region35: #{tpu_custom_call.1} parent=0 // pred_check_branch
    %230 = sbr.rel (0) target = $region37
  $region36: #{tpu_custom_call.1} parent=0 // pred_region
    _
  $region37: #{tpu_custom_call.1} parent=0 // pred_fallthru
    _

</llo_original>
